<compile_context>
chip_gen: v5e
topology: v5e:2x2
jax: 0.10.0
libtpu: 0.0.40
codegen_flags: <defaults>
</compile_context>

<pallas_src>
import functools

import jax
import jax.numpy as jnp
import numpy as np
from jax.experimental import pallas as pl
from jax.experimental.pallas import tpu as pltpu


# ---------------------------------------------------------------------------
# tiling helpers
# ---------------------------------------------------------------------------
_TARGET_BLOCK_BYTES = 4 << 20           # ~4 MiB of f32 logits per block
_VMEM_LIMIT = 40 * 1024 * 1024          # headroom on v7x (64 MiB physical VMEM)


def _cdiv(a, b):
    return -(-a // b)


def _round_up(a, b):
    return _cdiv(a, b) * b


def _choose_row_tile_nd(R, target_bytes):
    """Sublane tile for (tile_r, 128) f32 blocks (multiple of 8 or full R)."""
    budget = max(8, (target_bytes // (4 * 128)) // 8 * 8)
    if R <= budget:
        return R
    n = _cdiv(R, budget)
    return _round_up(_cdiv(R, n), 8)


def _choose_spatial_tile(S, C, target_bytes):
    """Lane tile for (C, tile_s) f32 blocks (multiple of 128 or full S)."""
    budget = max(128, (target_bytes // (4 * max(C, 1))) // 128 * 128)
    if S <= budget:
        return S
    n = _cdiv(S, budget)
    return _round_up(_cdiv(S, n), 128)


def _choose_row_tile_2d(n_pad, c_lanes, target_bytes):
    """Sublane tile for (tile_n, c_lanes) f32 blocks (multiple of 8)."""
    budget = max(8, (target_bytes // (4 * c_lanes)) // 8 * 8)
    return min(n_pad, budget)


def _choose_splits(n_parallel, n_tiles):
    """Extra spatial splits so the 'parallel' grid axis has enough work for
    v7x's two TensorCores when the batch axis alone is too small."""
    if n_parallel >= 8 or n_tiles < 2:
        return 1
    return int(min(n_tiles, _cdiv(8, n_parallel)))


def _cost(n_elems, in_bytes, out_bytes):
    # ~25 VPU ops + 3 transcendentals per element.
    return pl.CostEstimate(flops=int(25 * n_elems),
                           transcendentals=int(3 * n_elems),
                           bytes_accessed=int(in_bytes + out_bytes))


def _nbytes(a):
    return int(a.size) * np.dtype(a.dtype).itemsize


# ---------------------------------------------------------------------------
# element-wise math
# ---------------------------------------------------------------------------
def _pow_static(x, exponent):
    """x ** exponent for a static python-float exponent, x >= 0."""
    e = float(exponent)
    if e == 0.0:
        return jnp.ones_like(x)
    if e > 0.0 and e == int(e) and int(e) <= 8:
        r = x
        for _ in range(int(e) - 1):
            r = r * x
        return r
    safe = jnp.maximum(x, 1e-30)
    return jnp.where(x > 0.0, jnp.exp(e * jnp.log(safe)), jnp.zeros_like(x))


def _poly1_focal_elements(x, m, *, epsilon, alpha, gamma):
    """Element-wise poly-1 focal loss.

    x: float32 logits, m: bool one-hot mask (the targets).  One exp + one log1p
    per element; sigmoid via an EUP approx reciprocal + one Newton step.
    """
    ax = jnp.abs(x)
    e = jnp.exp(-ax)                              # shared exp(-|x|)   (EUP)
    log1pe = jnp.log1p(e)                         # CE softplus term   (EUP)
    d = 1.0 + e
    r = pl.reciprocal(d, approx=True)             # approx 1/(1+e)     (EUP)
    r = r * (2.0 - d * r)                         # one Newton step -> ~f32 exact
    p = jnp.where(x >= 0.0, r, e * r)             # sigmoid(x)

    # stable BCE-with-logits (weight / pos_weight = None):
    #   max(x, 0) - x*y + log1p(exp(-|x|)), with y = m
    ce = jnp.maximum(x, 0.0) - jnp.where(m, x, 0.0) + log1pe

    one_m_pt = jnp.where(m, 1.0 - p, p)           # 1 - pt
    pg = _pow_static(one_m_pt, gamma)             # (1 - pt) ** gamma
    fl = ce * pg
    if alpha >= 0:
        fl = jnp.where(m, jnp.float32(alpha), jnp.float32(1.0 - alpha)) * fl
    # (1 - pt) ** (gamma + 1) == pg * (1 - pt)
    return fl + epsilon * (pg * one_m_pt)


# ---------------------------------------------------------------------------
# kernels (shared by every layout; blocks are always 2-D in-kernel)
# ---------------------------------------------------------------------------
def _none_kernel(x_ref, lab_ref, out_ref, *, epsilon, alpha, gamma,
                 cls_grid, cls_iota_axis):
    x = x_ref[...].astype(jnp.float32)
    lab = lab_ref[...].astype(jnp.int32)
    if cls_grid:
        cls = pl.program_id(2)                    # scalar class id (grid axis)
    else:
        cls = jax.lax.broadcasted_iota(jnp.int32, x.shape, cls_iota_axis)
    m = lab == cls                                # implicit one-hot
    vals = _poly1_focal_elements(x, m, epsilon=epsilon, alpha=alpha, gamma=gamma)
    out_ref[...] = vals.astype(out_ref.dtype)


def _reduced_kernel(x_ref, lab_ref, out_ref, acc_ref, *, epsilon, alpha, gamma,
                    cls_grid, cls_iota_axis, part_axis, n_splits,
                    tiles_per_split, n_tiles, valid_last, need_part_mask,
                    need_overflow, cls_valid):
    r = pl.program_id(1)
    first = r == 0
    last = r == tiles_per_split - 1
    if cls_grid:
        c = pl.program_id(2)
        first = jnp.logical_and(first, c == 0)
        last = jnp.logical_and(last, c == pl.num_programs(2) - 1)

    @pl.when(first)
    def _init():
        acc_ref[...] = jnp.zeros_like(acc_ref)

    x = x_ref[...].astype(jnp.float32)
    lab = lab_ref[...].astype(jnp.int32)          # narrow labels upcast here
    if cls_grid:
        cls = pl.program_id(2)
    else:
        cls = jax.lax.broadcasted_iota(jnp.int32, x.shape, cls_iota_axis)
    m = lab == cls
    vals = _poly1_focal_elements(x, m, epsilon=epsilon, alpha=alpha, gamma=gamma)
    if cls_valid is not None:                     # padded class lanes (2-D path)
        vals = jnp.where(cls < cls_valid, vals, 0.0)

    if n_splits > 1:
        t_glob = (pl.program_id(0) % n_splits) * tiles_per_split + r
    else:
        t_glob = r

    def _add(masked):
        if masked:
            idx = jax.lax.broadcasted_iota(jnp.int32, vals.shape, part_axis)
            acc_ref[...] += jnp.where(idx < valid_last, vals, 0.0)
        else:
            acc_ref[...] += vals                  # pure VPU adds

    if need_part_mask:
        # Only the last *real* tile has padded rows/lanes; earlier tiles add
        # unmasked, overflow tiles of the spatial split contribute nothing.
        @pl.when(t_glob < n_tiles - 1)
        def _full_tile():
            _add(False)

        @pl.when(t_glob == n_tiles - 1)
        def _last_tile():
            _add(True)
    elif need_overflow:
        @pl.when(t_glob < n_tiles)
        def _valid_tile():
            _add(False)
    else:
        _add(False)

    @pl.when(last)
    def _finalize():
        # single cross-lane reduce + tiny store per (batch, split)
        out_ref[...] = jnp.sum(acc_ref[...], keepdims=True)


# ---------------------------------------------------------------------------
# wrappers
# ---------------------------------------------------------------------------
def _poly1_nd(logits, labels, epsilon, alpha, gamma, reduction, target_bytes):
    N, C = logits.shape[0], logits.shape[1]
    spatial = logits.shape[2:]
    if labels.shape != (N,) + spatial:
        raise ValueError(f"labels shape {labels.shape} does not match logits "
                         f"{logits.shape} (expected {(N,) + spatial})")
    S = int(np.prod(spatial))
    out_dtype = logits.dtype
    n_elems = N * C * S

    use_rows = S >= 128 and S % 128 == 0

    if use_rows:
        # lane-dense [N, C, R, 128] view: full-vreg spatial slabs, class id on
        # the innermost grid axis (full sublane utilization for any C).
        R = S // 128
        tile = _choose_row_tile_nd(R, target_bytes)
        n_tiles = _cdiv(R, tile)
        x = logits.reshape(N, C, R, 128)
        lab = labels.reshape(N, 1, R, 128)
        xblk = (None, None, tile, 128)
        lblk = (None, None, tile, 128)
        valid_last = R - (n_tiles - 1) * tile
        need_part = (n_tiles * tile) != R
        part_axis = 0
        cls_grid = True
        cls_iota_axis = None
    else:
        # fallback: classes on sublanes, flattened spatial on lanes.
        tile = _choose_spatial_tile(S, C, target_bytes)
        n_tiles = _cdiv(S, tile)
        x = logits.reshape(N, C, S)
        lab = labels.reshape(N, 1, S)
        xblk = (None, C, tile)
        lblk = (None, 1, tile)
        valid_last = S - (n_tiles - 1) * tile
        need_part = (n_tiles * tile) != S
        part_axis = 1
        cls_grid = False
        cls_iota_axis = 0

    io_bytes = _nbytes(x) + _nbytes(lab)

    if reduction == "none":
        # NOTE: with ~4 MiB blocks Buffered(2) hides the DMA on every
        # generation; add pipeline_mode=pl.Buffered(3) only if profiling on
        # v5e shows exposed DMA at small shapes.
        if use_rows:
            grid = (N, n_tiles, C)
            in_specs = [pl.BlockSpec(xblk, lambda n, t, c: (n, c, t, 0)),
                        pl.BlockSpec(lblk, lambda n, t, c: (n, 0, t, 0))]
            out_spec = pl.BlockSpec(xblk, lambda n, t, c: (n, c, t, 0))
            dims = ("parallel", "parallel", "parallel")
        else:
            grid = (N, n_tiles)
            in_specs = [pl.BlockSpec(xblk, lambda n, t: (n, 0, t)),
                        pl.BlockSpec(lblk, lambda n, t: (n, 0, t))]
            out_spec = pl.BlockSpec(xblk, lambda n, t: (n, 0, t))
            dims = ("parallel", "parallel")

        kernel = functools.partial(
            _none_kernel, epsilon=epsilon, alpha=alpha, gamma=gamma,
            cls_grid=cls_grid, cls_iota_axis=cls_iota_axis)
        out = pl.pallas_call(
            kernel,
            out_shape=jax.ShapeDtypeStruct(x.shape, out_dtype),
            grid_spec=pltpu.PrefetchScalarGridSpec(
                num_scalar_prefetch=0, grid=grid,
                in_specs=in_specs, out_specs=out_spec),
            compiler_params=pltpu.CompilerParams(
                dimension_semantics=dims, vmem_limit_bytes=_VMEM_LIMIT),
            cost_estimate=_cost(n_elems, io_bytes,
                                n_elems * np.dtype(out_dtype).itemsize),
        )(x, lab)
        return out.reshape(logits.shape)

    # ---- mean / sum ----
    n_splits = _choose_splits(N, n_tiles)
    tps = _cdiv(n_tiles, n_splits)
    need_ovf = (n_splits * tps) != n_tiles
    P = N * n_splits

    def _tile_index(p, t):
        if n_splits == 1:
            return p, t
        tt = (p % n_splits) * tps + t
        if need_ovf:
            tt = jnp.minimum(tt, n_tiles - 1)
        return p // n_splits, tt

    if use_rows:
        grid = (P, tps, C)

        def xmap(p, t, c):
            n, tt = _tile_index(p, t)
            return (n, c, tt, 0)

        def lmap(p, t, c):
            n, tt = _tile_index(p, t)
            return (n, 0, tt, 0)          # independent of c -> no re-DMA per class

        out_map = lambda p, t, c: (p, 0, 0)
        dims = ("parallel", "arbitrary", "arbitrary")
        acc_shape = (tile, 128)
    else:
        grid = (P, tps)

        def xmap(p, t):
            n, tt = _tile_index(p, t)
            return (n, 0, tt)

        def lmap(p, t):
            n, tt = _tile_index(p, t)
            return (n, 0, tt)

        out_map = lambda p, t: (p, 0, 0)
        dims = ("parallel", "arbitrary")
        acc_shape = (C, tile)

    kernel = functools.partial(
        _reduced_kernel, epsilon=epsilon, alpha=alpha, gamma=gamma,
        cls_grid=cls_grid, cls_iota_axis=cls_iota_axis, part_axis=part_axis,
        n_splits=n_splits, tiles_per_split=tps, n_tiles=n_tiles,
        valid_last=valid_last, need_part_mask=need_part,
        need_overflow=need_ovf, cls_valid=None)

    partial_sums = pl.pallas_call(
        kernel,
        out_shape=jax.ShapeDtypeStruct((P, 1, 1), jnp.float32),
        grid_spec=pltpu.PrefetchScalarGridSpec(
            num_scalar_prefetch=0, grid=grid,
            in_specs=[pl.BlockSpec(xblk, xmap), pl.BlockSpec(lblk, lmap)],
            out_specs=pl.BlockSpec((None, 1, 1), out_map),
            scratch_shapes=[pltpu.VMEM(acc_shape, jnp.float32)]),
        compiler_params=pltpu.CompilerParams(
            dimension_semantics=dims, vmem_limit_bytes=_VMEM_LIMIT),
        cost_estimate=_cost(n_elems, io_bytes, P * 4),
    )(x, lab)

    total = jnp.sum(partial_sums)
    if reduction == "mean":
        total = total / jnp.float32(n_elems)
    return total.astype(out_dtype)


def _poly1_2d(logits, labels, epsilon, alpha, gamma, reduction, target_bytes):
    N, C = logits.shape
    if labels.shape != (N,):
        raise ValueError(f"labels shape {labels.shape} does not match logits "
                         f"{logits.shape} (expected ({N},))")
    out_dtype = logits.dtype
    n_elems = N * C

    c_lanes = _round_up(C, 128)                 # lane-dense class axis
    n_pad = _round_up(N, 8)
    tile_n = _choose_row_tile_2d(n_pad, c_lanes, target_bytes)
    n_tiles = _cdiv(n_pad, tile_n)

    x = logits
    if (n_pad, c_lanes) != (N, C):
        x = jnp.pad(x, ((0, n_pad - N), (0, c_lanes - C)))
    lab = labels.reshape(N, 1)
    if n_pad != N:
        lab = jnp.pad(lab, ((0, n_pad - N), (0, 0)))

    io_bytes = _nbytes(x) + _nbytes(lab)

    if reduction == "none":
        kernel = functools.partial(
            _none_kernel, epsilon=epsilon, alpha=alpha, gamma=gamma,
            cls_grid=False, cls_iota_axis=1)
        out = pl.pallas_call(
            kernel,
            out_shape=jax.ShapeDtypeStruct((n_pad, c_lanes), out_dtype),
            grid_spec=pltpu.PrefetchScalarGridSpec(
                num_scalar_prefetch=0, grid=(n_tiles,),
                in_specs=[pl.BlockSpec((tile_n, c_lanes), lambda i: (i, 0)),
                          pl.BlockSpec((tile_n, 1), lambda i: (i, 0))],
                out_specs=pl.BlockSpec((tile_n, c_lanes), lambda i: (i, 0))),
            compiler_params=pltpu.CompilerParams(
                dimension_semantics=("parallel",),
                vmem_limit_bytes=_VMEM_LIMIT),
            cost_estimate=_cost(n_elems, io_bytes,
                                n_pad * c_lanes * np.dtype(out_dtype).itemsize),
        )(x, lab)
        return out[:N, :C]

    # ---- mean / sum ----
    n_splits = _choose_splits(1, n_tiles)       # leading parallel axis (v7x)
    tps = _cdiv(n_tiles, n_splits)
    need_ovf = (n_splits * tps) != n_tiles
    need_part = (n_tiles * tile_n) != N
    valid_last = N - (n_tiles - 1) * tile_n
    cls_valid = C if c_lanes != C else None

    def rmap(p, t):
        if n_splits == 1:
            return (t, 0)
        tt = p * tps + t
        if need_ovf:
            tt = jnp.minimum(tt, n_tiles - 1)
        return (tt, 0)

    kernel = functools.partial(
        _reduced_kernel, epsilon=epsilon, alpha=alpha, gamma=gamma,
        cls_grid=False, cls_iota_axis=1, part_axis=0,
        n_splits=n_splits, tiles_per_split=tps, n_tiles=n_tiles,
        valid_last=valid_last, need_part_mask=need_part,
        need_overflow=need_ovf, cls_valid=cls_valid)

    partial_sums = pl.pallas_call(
        kernel,
        out_shape=jax.ShapeDtypeStruct((n_splits, 1, 1), jnp.float32),
        grid_spec=pltpu.PrefetchScalarGridSpec(
            num_scalar_prefetch=0, grid=(n_splits, tps),
            in_specs=[pl.BlockSpec((tile_n, c_lanes), rmap),
                      pl.BlockSpec((tile_n, 1), rmap)],
            out_specs=pl.BlockSpec((None, 1, 1), lambda p, t: (p, 0, 0)),
            scratch_shapes=[pltpu.VMEM((tile_n, c_lanes), jnp.float32)]),
        compiler_params=pltpu.CompilerParams(
            dimension_semantics=("parallel", "arbitrary"),
            vmem_limit_bytes=_VMEM_LIMIT),
        cost_estimate=_cost(n_elems, io_bytes, n_splits * 4),
    )(x, lab)

    total = jnp.sum(partial_sums)
    if reduction == "mean":
        total = total / jnp.float32(N * C)
    return total.astype(out_dtype)


def poly1_focal_loss(logits, labels, *, epsilon=1.0, alpha=0.25, gamma=2.0,
                     reduction="mean", weight=None, pos_weight=None,
                     label_is_onehot=False,
                     target_block_bytes=_TARGET_BLOCK_BYTES):
    """Pallas-TPU forward of Poly1FocalLoss (module defaults: class-id labels,
    weight=None, pos_weight=None)."""
    if weight is not None or pos_weight is not None:
        # TODO(synk): per-class weight / pos_weight rescaling not wired in.
        raise NotImplementedError("weight / pos_weight are not supported")
    if label_is_onehot:
        # TODO(synk): label_is_onehot=True (dense one-hot targets) not wired in.
        raise NotImplementedError("label_is_onehot=True is not supported")
    if reduction not in ("mean", "sum", "none"):
        raise ValueError(f"unknown reduction: {reduction}")

    if labels.dtype != jnp.int32:
        # TODO(synk): int8/int16 label streams could be passed straight through
        # (in-kernel upcast) to cut label HBM traffic; normalized to int32 here.
        labels = labels.astype(jnp.int32)

    eps, al, ga = float(epsilon), float(alpha), float(gamma)

    if logits.ndim == 2:
        return _poly1_2d(logits, labels, eps, al, ga, reduction,
                         target_block_bytes)
    if logits.ndim >= 3:
        return _poly1_nd(logits, labels, eps, al, ga, reduction,
                         target_block_bytes)
    raise ValueError("logits must have shape [N, C] or [N, C, ...]")


# ---------------------------------------------------------------------------
# pure-JAX reference (for correctness check)
# ---------------------------------------------------------------------------
def _reference(logits, labels, *, epsilon=1.0, alpha=0.25, gamma=2.0,
               reduction="mean"):
    num_classes = logits.shape[1]
    if labels.ndim == 1:
        y = jax.nn.one_hot(labels, num_classes, dtype=logits.dtype)
    else:
        y = jax.nn.one_hot(labels, num_classes, axis=1, dtype=logits.dtype)
    p = jax.nn.sigmoid(logits)
    ce = jnp.maximum(logits, 0.0) - logits * y + jnp.log1p(jnp.exp(-jnp.abs(logits)))
    pt = y * p + (1.0 - y) * (1.0 - p)
    fl = ce * (1.0 - pt) ** gamma
    if alpha >= 0:
        at = alpha * y + (1.0 - alpha) * (1.0 - y)
        fl = at * fl
    poly1 = fl + epsilon * (1.0 - pt) ** (gamma + 1.0)
    if reduction == "mean":
        return poly1.mean()
    if reduction == "sum":
        return poly1.sum()
    return poly1


if __name__ == "__main__":
    key = jax.random.PRNGKey(0)
    ks = jax.random.split(key, 12)

    # Segmentation-style [N, C, H, W], S = H*W a multiple of 128 (row layout).
    N, C, H, W = 2, 4, 16, 16
    logits = jax.random.normal(ks[0], (N, C, H, W), dtype=jnp.float32)
    labels = jax.random.randint(ks[1], (N, H, W), 0, C, dtype=jnp.int32)
    for red, atol in (("mean", 1e-5), ("sum", 1e-3), ("none", 1e-5)):
        got = jax.block_until_ready(poly1_focal_loss(logits, labels, reduction=red))
        np.testing.assert_allclose(
            np.asarray(got), np.asarray(_reference(logits, labels, reduction=red)),
            rtol=5e-4, atol=atol)

    # Segmentation-style with S not a multiple of 128 (fallback layout).
    logits_b = jax.random.normal(ks[2], (2, 3, 10, 10), dtype=jnp.float32)
    labels_b = jax.random.randint(ks[3], (2, 10, 10), 0, 3, dtype=jnp.int32)
    for red in ("mean", "none"):
        got = jax.block_until_ready(poly1_focal_loss(logits_b, labels_b, reduction=red))
        np.testing.assert_allclose(
            np.asarray(got), np.asarray(_reference(logits_b, labels_b, reduction=red)),
            rtol=5e-4, atol=1e-5)

    # Classification-style [N, C].
    logits_c = jax.random.normal(ks[4], (8, 5), dtype=jnp.float32)
    labels_c = jax.random.randint(ks[5], (8,), 0, 5, dtype=jnp.int32)
    for red in ("mean", "none"):
        got = jax.block_until_ready(poly1_focal_loss(logits_c, labels_c, reduction=red))
        np.testing.assert_allclose(
            np.asarray(got), np.asarray(_reference(logits_c, labels_c, reduction=red)),
            rtol=5e-4, atol=1e-5)

    # Stress the multi-tile / spatial-split / partial-tile / overflow paths with
    # a tiny forced block budget (same code paths a large image would take).
    logits_d = jax.random.normal(ks[6], (1, 3, 193, 128), dtype=jnp.float32)
    labels_d = jax.random.randint(ks[7], (1, 193, 128), 0, 3, dtype=jnp.int32)
    got = jax.block_until_ready(
        poly1_focal_loss(logits_d, labels_d, reduction="mean",
                         target_block_bytes=24 * 128 * 4))
    np.testing.assert_allclose(
        np.asarray(got), np.asarray(_reference(logits_d, labels_d, reduction="mean")),
        rtol=5e-4, atol=1e-5)

    logits_e = jax.random.normal(ks[8], (2, 3, 5, 100), dtype=jnp.float32)
    labels_e = jax.random.randint(ks[9], (2, 5, 100), 0, 3, dtype=jnp.int32)
    got = jax.block_until_ready(
        poly1_focal_loss(logits_e, labels_e, reduction="mean",
                         target_block_bytes=128 * 3 * 4))
    np.testing.assert_allclose(
        np.asarray(got), np.asarray(_reference(logits_e, labels_e, reduction="mean")),
        rtol=5e-4, atol=1e-5)

    logits_f = jax.random.normal(ks[10], (73, 5), dtype=jnp.float32)
    labels_f = jax.random.randint(ks[11], (73,), 0, 5, dtype=jnp.int32)
    got = jax.block_until_ready(
        poly1_focal_loss(logits_f, labels_f, reduction="mean",
                         target_block_bytes=8 * 128 * 4))
    np.testing.assert_allclose(
        np.asarray(got), np.asarray(_reference(logits_f, labels_f, reduction="mean")),
        rtol=5e-4, atol=1e-5)

    print("KERNEL_OK")
</pallas_src>

<mosaic_0001>
module attributes {stable_mosaic.version = 11 : i64} {
  func.func @_reduced_kernel(%arg0: i32, %arg1: i32, %arg2: i32, %arg3: memref<1x1x2x128xf32, #tpu.memory_space<vmem>>, %arg4: memref<1x1x2x128xi32, #tpu.memory_space<vmem>>, %arg5: memref<1x1x1xf32, #tpu.memory_space<vmem>>, %arg6: memref<2x128xf32, #tpu.memory_space<vmem>>) attributes {dimension_semantics = [#tpu.dimension_semantics<parallel>, #tpu.dimension_semantics<arbitrary>, #tpu.dimension_semantics<arbitrary>], iteration_bounds = array<i64: 2, 1, 4>, scalar_prefetch = 0 : i64, scratch_operands = 1 : i64, tpu.core_type = #tpu.core_type<tc>, window_params = [{transform_indices = @transform_0, window_bounds = array<i64: 1, 1, 2, 128>}, {transform_indices = @transform_1, window_bounds = array<i64: 1, 1, 2, 128>}, {transform_indices = @transform_2, window_bounds = array<i64: 1, 1, 1>}]} {
    %c0_i32 = arith.constant 0 : i32
    %0 = arith.cmpi eq, %arg1, %c0_i32 : i32
    %c0_i32_0 = arith.constant 0 : i32
    %1 = arith.cmpi eq, %arg1, %c0_i32_0 : i32
    %c0_i32_1 = arith.constant 0 : i32
    %2 = arith.cmpi eq, %arg2, %c0_i32_1 : i32
    %3 = arith.andi %0, %2 : i1
    %c3_i32 = arith.constant 3 : i32
    %4 = arith.cmpi eq, %arg2, %c3_i32 : i32
    %5 = arith.andi %1, %4 : i1
    %6 = arith.extui %3 : i1 to i32
    %c0_i32_2 = arith.constant 0 : i32
    %7 = arith.cmpi ne, %6, %c0_i32_2 : i32
    scf.if %7 {
      %cst_24 = arith.constant 0.000000e+00 : f32
      %54 = vector.broadcast %cst_24 : f32 to vector<2x128xf32>
      %c0_25 = arith.constant 0 : index
      %c0_26 = arith.constant 0 : index
      %55 = vector.load %arg6[%c0_25, %c0_26] : memref<2x128xf32, #tpu.memory_space<vmem>>, vector<2x128xf32>
      tpu.vector_store %arg6[%c0_25, %c0_26], %54 {strides = array<i32>} : memref<2x128xf32, #tpu.memory_space<vmem>>, vector<2x128xf32>,
    } else {
    }
    %c0 = arith.constant 0 : index
    %c0_3 = arith.constant 0 : index
    %c0_4 = arith.constant 0 : index
    %c0_5 = arith.constant 0 : index
    %8 = vector.load %arg3[%c0, %c0_3, %c0_4, %c0_5] : memref<1x1x2x128xf32, #tpu.memory_space<vmem>>, vector<1x1x2x128xf32>
    %9 = vector.shape_cast %8 : vector<1x1x2x128xf32> to vector<2x128xf32>
    %c0_6 = arith.constant 0 : index
    %c0_7 = arith.constant 0 : index
    %c0_8 = arith.constant 0 : index
    %c0_9 = arith.constant 0 : index
    %10 = vector.load %arg4[%c0_6, %c0_7, %c0_8, %c0_9] : memref<1x1x2x128xi32, #tpu.memory_space<vmem>>, vector<1x1x2x128xi32>
    %11 = vector.shape_cast %10 : vector<1x1x2x128xi32> to vector<2x128xi32>
    %12 = vector.broadcast %arg2 : i32 to vector<2x128xi32>
    %13 = arith.cmpi eq, %11, %12 : vector<2x128xi32>
    %14 = math.absf %9 : vector<2x128xf32>
    %cst = arith.constant 0.000000e+00 : f32
    %15 = vector.broadcast %cst : f32 to vector<2x128xf32>
    %16 = arith.subf %15, %14 : vector<2x128xf32>
    %17 = math.exp %16 : vector<2x128xf32>
    %18 = math.log1p %17 : vector<2x128xf32>
    %cst_10 = arith.constant 1.000000e+00 : f32
    %19 = vector.broadcast %cst_10 : f32 to vector<2x128xf32>
    %20 = arith.addf %19, %17 : vector<2x128xf32>
    %21 = tpu.reciprocal %20 {approx = true} : vector<2x128xf32> -> vector<2x128xf32>
    %22 = arith.mulf %20, %21 : vector<2x128xf32>
    %cst_11 = arith.constant 2.000000e+00 : f32
    %23 = vector.broadcast %cst_11 : f32 to vector<2x128xf32>
    %24 = arith.subf %23, %22 : vector<2x128xf32>
    %25 = arith.mulf %21, %24 : vector<2x128xf32>
    %cst_12 = arith.constant 0.000000e+00 : f32
    %26 = vector.broadcast %cst_12 : f32 to vector<2x128xf32>
    %27 = arith.cmpf oge, %9, %26 : vector<2x128xf32>
    %28 = arith.mulf %17, %25 : vector<2x128xf32>
    %29 = arith.select %27, %25, %28 : vector<2x128xi1>, vector<2x128xf32>
    %cst_13 = arith.constant 0.000000e+00 : f32
    %30 = vector.broadcast %cst_13 : f32 to vector<2x128xf32>
    %31 = arith.maximumf %9, %30 : vector<2x128xf32>
    %cst_14 = arith.constant 0.000000e+00 : f32
    %32 = vector.broadcast %cst_14 : f32 to vector<2x128xf32>
    %33 = arith.select %13, %9, %32 : vector<2x128xi1>, vector<2x128xf32>
    %34 = arith.subf %31, %33 : vector<2x128xf32>
    %35 = arith.addf %34, %18 : vector<2x128xf32>
    %cst_15 = arith.constant 1.000000e+00 : f32
    %36 = vector.broadcast %cst_15 : f32 to vector<2x128xf32>
    %37 = arith.subf %36, %29 : vector<2x128xf32>
    %38 = arith.select %13, %37, %29 : vector<2x128xi1>, vector<2x128xf32>
    %39 = arith.mulf %38, %38 : vector<2x128xf32>
    %40 = arith.mulf %35, %39 : vector<2x128xf32>
    %cst_16 = arith.constant 2.500000e-01 : f32
    %cst_17 = arith.constant 7.500000e-01 : f32
    %41 = vector.broadcast %cst_16 : f32 to vector<2x128xf32>
    %42 = vector.broadcast %cst_17 : f32 to vector<2x128xf32>
    %43 = arith.select %13, %41, %42 : vector<2x128xi1>, vector<2x128xf32>
    %44 = arith.mulf %43, %40 : vector<2x128xf32>
    %45 = arith.mulf %39, %38 : vector<2x128xf32>
    %cst_18 = arith.constant 1.000000e+00 : f32
    %46 = vector.broadcast %cst_18 : f32 to vector<2x128xf32>
    %47 = arith.mulf %46, %45 : vector<2x128xf32>
    %48 = arith.addf %44, %47 : vector<2x128xf32>
    %c0_19 = arith.constant 0 : index
    %c0_20 = arith.constant 0 : index
    %49 = vector.load %arg6[%c0_19, %c0_20] : memref<2x128xf32, #tpu.memory_space<vmem>>, vector<2x128xf32>
    %50 = arith.addf %49, %48 : vector<2x128xf32>
    %c0_21 = arith.constant 0 : index
    %c0_22 = arith.constant 0 : index
    %51 = vector.load %arg6[%c0_21, %c0_22] : memref<2x128xf32, #tpu.memory_space<vmem>>, vector<2x128xf32>
    tpu.vector_store %arg6[%c0_21, %c0_22], %50 {strides = array<i32>} : memref<2x128xf32, #tpu.memory_space<vmem>>, vector<2x128xf32>,
    %52 = arith.extui %5 : i1 to i32
    %c0_i32_23 = arith.constant 0 : i32
    %53 = arith.cmpi ne, %52, %c0_i32_23 : i32
    scf.if %53 {
      %c0_24 = arith.constant 0 : index
      %c0_25 = arith.constant 0 : index
      %54 = vector.load %arg6[%c0_24, %c0_25] : memref<2x128xf32, #tpu.memory_space<vmem>>, vector<2x128xf32>
      %55 = vector.shape_cast %54 : vector<2x128xf32> to vector<1x2x128xf32>
      %cst_26 = arith.constant dense<0.000000e+00> : vector<1xf32>
      %56 = vector.multi_reduction <add>, %55, %cst_26 [1, 2] : vector<1x2x128xf32> to vector<1xf32>
      %57 = vector.shape_cast %56 : vector<1xf32> to vector<1x1x1xf32>
      %58 = vector.extract %57[0, 0, 0] : f32 from vector<1x1x1xf32>
      %59 = vector.broadcast %58 : f32 to vector<1x1xf32>
      %c0_27 = arith.constant 0 : index
      %c0_28 = arith.constant 0 : index
      %c0_29 = arith.constant 0 : index
      %60 = vector.load %arg5[%c0_27, %c0_28, %c0_29] : memref<1x1x1xf32, #tpu.memory_space<vmem>>, vector<1x1x1xf32>
      %61 = vector.shape_cast %60 : vector<1x1x1xf32> to vector<1x1xf32>
      %62 = vector.shape_cast %59 : vector<1x1xf32> to vector<1x1x1xf32>
      tpu.vector_store %arg5[%c0_27, %c0_28, %c0_29], %62 {strides = array<i32>} : memref<1x1x1xf32, #tpu.memory_space<vmem>>, vector<1x1x1xf32>,
    } else {
    }
    return
  }
  func.func @transform_0(%arg0: i32, %arg1: i32, %arg2: i32) -> (i32, i32, i32, i32) {
    %c0_i32 = arith.constant 0 : i32
    %c0_i32_0 = arith.constant 0 : i32
    return %arg0, %arg2, %arg1, %c0_i32 : i32, i32, i32, i32
  }
  func.func @transform_1(%arg0: i32, %arg1: i32, %arg2: i32) -> (i32, i32, i32, i32) {
    %c0_i32 = arith.constant 0 : i32
    %c0_i32_0 = arith.constant 0 : i32
    %c0_i32_1 = arith.constant 0 : i32
    return %arg0, %c0_i32, %arg1, %c0_i32_0 : i32, i32, i32, i32
  }
  func.func @transform_2(%arg0: i32, %arg1: i32, %arg2: i32) -> (i32, i32, i32) {
    %c0_i32 = arith.constant 0 : i32
    %c0_i32_0 = arith.constant 0 : i32
    %c0_i32_1 = arith.constant 0 : i32
    return %arg0, %c0_i32, %c0_i32_0 : i32, i32, i32
  }
}

</mosaic_0001>

<llo_original>
// kernel: tpu_custom_call.1
$region0: #{tpu_custom_call.1}
  #allocation0 [shape = 'u32[]', space=smem, size = 0x4, offset = 0x4, fixed_abs, tag = 'smem constant byte address 0x4 - core index']
  #allocation1 [shape = 'u32[72,128]{1,0:T(1,128)}', space=vmem, size = 0x9000, scoped, tag = 'internal scratch']
  #allocation2 [shape = 'f32[2,128]{1,0:T(2,128)}', space=vmem, size = 0x400, scoped, tag = 'scratch operand']
  %s0 = inlined_call_operand.hbm [shape: f32[2,4,2,128], index: 0, kind: input, shape index: {}]
  %s1 = inlined_call_operand.hbm [shape: s32[2,1,2,128], index: 1, kind: input, shape index: {}]
  %s2 = inlined_call_operand.vmem [shape: f32[2,1,1], index: 2, kind: output, shape index: {}]
  %s3 = sld [smem:[#allocation0]]
  $region57: #{tpu_custom_call.1} parent=0
    _
  %s5 = ssub.s32 1, %s3
  %s6 = scalar_select 0, %s5, %s3
  $region1: #{tpu_custom_call.1} parent=0
    #allocation3 [shape = 'u8[2048]{0}', space=vmem, size = 0x800, scoped, tag = 'input window, operand 0']
    #allocation4 [shape = 's32[2]{0}', space=sflag, size = 0x8, scoped, tag = 'scoped memory for tpu_custom_call.1']
    #allocation5 [shape = 'u8[2048]{0}', space=vmem, size = 0x800, scoped, tag = 'input window, operand 1']
    #allocation6 [shape = 's32[2]{0}', space=sflag, size = 0x8, scoped, tag = 'scoped memory for tpu_custom_call.1']
    %7 = vsyncpa [#allocation4], 0
    %s8 = scalar_lea.sflag [#allocation4], 1
    %9 = vsyncpa %s8, 0
    %10 = vsyncpa [#allocation6], 0
    %s11 = scalar_lea.sflag [#allocation6], 1
    %12 = vsyncpa %s11, 0
    loop: start=0, step=1, limit=10
    $region2: #{tpu_custom_call.1} parent=1 // loop_pre_header
      _
    $region3: #{tpu_custom_call.1} parent=1 // loop_header
      %s14 = sphi 0, %s18
      %p15 = scmp.ge.s32.totalorder %s14, 10
      %s21 = sphi 0, %s40
      %s22 = sphi 0, %s36
      %s23 = sphi 0, %s32
      %s24 = sphi 0, %s21
      %s25 = sphi 0, %s22
      %s26 = sphi 0, %s23
      %s27 = sphi 0, %s24
      %s28 = sphi 0, %s25
      %s29 = sphi 0, %s26
      %s47 = sphi 0, %s49
      %s50 = sphi 0, %s47
      %s51 = sphi 0, %s50
      %s67 = sphi 0, %s51
      %s75 = sphi 0, %s77
      %s78 = sphi 0, %s75
      %s79 = sphi 0, %s78
      %s95 = sphi 0, %s79
      %s101 = sphi 0, %s103
      %s104 = sphi 0, %s101
      %s105 = sphi 0, %s104
      %s121 = sphi 0, %s105
    $region4: #{tpu_custom_call.1} parent=1 // loop_header_branch
      %17 = sbr.rel (%p15) target = $region8
    $region5: #{tpu_custom_call.1} parent=1 // loop_body
      %s19 = ssub.s32 %s14, 1
      %s20 = ssub.s32 %s14, 2
      %s30 = sadd.s32 1, %s23
      %p31 = scmp.ge.s32.totalorder %s30, 4
      %s32 = scalar_select %p31, 0, %s30
      %s33 = sadd.s32 1, %s22
      %s34 = scalar_select %p31, %s33, %s22
      %p35 = scmp.ge.s32.totalorder %s34, 1
      %s36 = scalar_select %p35, 0, %s34
      %s37 = sadd.s32 1, %s21
      %s38 = scalar_select %p35, %s37, %s21
      %p39 = scmp.ge.s32.totalorder %s38, 2
      %s40 = scalar_select %p39, 0, %s38
      %s41 = ssub.s32 %s21, %s40
      %s42 = ssub.s32 %s23, %s32
      %s43 = sor.u32 %s41, %s42
      %s44 = ssub.s32 %s22, %s36
      %s45 = sor.u32 %s43, %s44
      %p46 = scmp.eq.s32.totalorder %s45, 0
      %s48 = sadd.s32 %s47, 1
      %s49 = scalar_select %p46, %s47, %s48
      %p52 = pneg %p46
      %p53 = scmp.eq.s32.totalorder %s14, 7
      %p54 = por %p52, %p53
      %p55 = scmp.ne.s32.totalorder %s47, %s50
      %p56 = scmp.eq.s32.totalorder %s14, 0
      %p57 = por %p55, %p56
      %p58 = scmp.ne.s32.totalorder %s47, %s50
      %p59 = scmp.eq.s32.totalorder %s19, 7
      %p60 = por %p58, %p59
      %p61 = scmp.ne.s32.totalorder %s50, %s51
      %p62 = scmp.eq.s32.totalorder %s19, 0
      %p63 = por %p61, %p62
      %p64 = scmp.ne.s32.totalorder %s50, %s51
      %p65 = scmp.eq.s32.totalorder %s20, 7
      %p66 = por %p64, %p65
      %p68 = scmp.ne.s32.totalorder %s51, %s67
      %p69 = scmp.eq.s32.totalorder %s20, 0
      %p70 = por %p68, %p69
      %s71 = ssub.s32 %s21, %s40
      %s72 = ssub.s32 %s22, %s36
      %s73 = sor.u32 %s71, %s72
      %p74 = scmp.eq.s32.totalorder %s73, 0
      %s76 = sadd.s32 %s75, 1
      %s77 = scalar_select %p74, %s75, %s76
      %p80 = pneg %p74
      %p81 = scmp.eq.s32.totalorder %s14, 7
      %p82 = por %p80, %p81
      %p83 = scmp.ne.s32.totalorder %s75, %s78
      %p84 = scmp.eq.s32.totalorder %s14, 0
      %p85 = por %p83, %p84
      %p86 = scmp.ne.s32.totalorder %s75, %s78
      %p87 = scmp.eq.s32.totalorder %s19, 7
      %p88 = por %p86, %p87
      %p89 = scmp.ne.s32.totalorder %s78, %s79
      %p90 = scmp.eq.s32.totalorder %s19, 0
      %p91 = por %p89, %p90
      %p92 = scmp.ne.s32.totalorder %s78, %s79
      %p93 = scmp.eq.s32.totalorder %s20, 7
      %p94 = por %p92, %p93
      %p96 = scmp.ne.s32.totalorder %s79, %s95
      %p97 = scmp.eq.s32.totalorder %s20, 0
      %p98 = por %p96, %p97
      %s99 = ssub.s32 %s21, %s40
      %p100 = scmp.eq.s32.totalorder %s99, 0
      %s102 = sadd.s32 %s101, 1
      %s103 = scalar_select %p100, %s101, %s102
      %p106 = pneg %p100
      %p107 = scmp.eq.s32.totalorder %s14, 7
      %p108 = por %p106, %p107
      %p109 = scmp.ne.s32.totalorder %s101, %s104
      %p110 = scmp.eq.s32.totalorder %s14, 0
      %p111 = por %p109, %p110
      %p112 = scmp.ne.s32.totalorder %s101, %s104
      %p113 = scmp.eq.s32.totalorder %s19, 7
      %p114 = por %p112, %p113
      %p115 = scmp.ne.s32.totalorder %s104, %s105
      %p116 = scmp.eq.s32.totalorder %s19, 0
      %p117 = por %p115, %p116
      %p118 = scmp.ne.s32.totalorder %s104, %s105
      %p119 = scmp.eq.s32.totalorder %s20, 7
      %p120 = por %p118, %p119
      %p122 = scmp.ne.s32.totalorder %s105, %s121
      %p123 = scmp.eq.s32.totalorder %s20, 0
      %p124 = por %p122, %p123
      %p125 = scmp.le.s32.totalorder 1, %s14
      %p126 = scmp.lt.s32.totalorder %s14, 9
      %p127 = pnand %p125, %p126
      %p128 = pneg %p127
      // Predicated region
      $region9: #{tpu_custom_call.1} parent=5 // pred_check
        _
      $region10: #{tpu_custom_call.1} parent=5 // pred_check_branch
        %130 = sbr.rel (%p127) target = $region12
      $region11: #{tpu_custom_call.1} parent=5 // pred_region
        %s131 = ssub.s32 %s14, 1
      $region12: #{tpu_custom_call.1} parent=5 // pred_fallthru
        _
      %p132 = scmp.lt.s32.totalorder %s14, 8
      // Predicated region
      $region13: #{tpu_custom_call.1} parent=5 // pred_check
        %p133 = pneg %p132
      $region14: #{tpu_custom_call.1} parent=5 // pred_check_branch
        %135 = sbr.rel (%p133) target = $region16
      $region15: #{tpu_custom_call.1} parent=5 // pred_region
        // Predicated region
        $region17: #{tpu_custom_call.1} parent=15 // pred_check
          %p136 = pneg %p57
        $region18: #{tpu_custom_call.1} parent=15 // pred_check_branch
          %138 = sbr.rel (%p136) target = $region20
        $region19: #{tpu_custom_call.1} parent=15 // pred_region
          %s139 = sand.u32 %s47, 1
          %s140 = scalar_lea.sflag [#allocation4], %s139
          %s141 = sand.u32 %s47, 1
          %s142 = smul.addr %s141, 2
          %s143 = scalar_lea.vmem [#allocation3], %s142
          %145 = vsyncadd %s140, 0
          %s146 = sadd.s32 %s22, %s23
          %s147 = smul.addr %s21, 4
          %s148 = sadd.s32 %s146, %s147
          %s149 = smul.addr %s148, 2
          %s150 = scalar_lea.hbm %s0, %s149
          %s152 = sshll.u32 %s150, 4
          %s153 = int_to_ptr.hbm [resolvable:$true] %s152
          %s154 = sshll.u32 %s143, 4
          %s155 = int_to_ptr.vmem [resolvable:$true] %s154
          %157 = dma.hbm_to_vmem [thread:$0]  %s153, 32, %s155, %s140
        $region20: #{tpu_custom_call.1} parent=15 // pred_fallthru
          _
        // Predicated region
        $region21: #{tpu_custom_call.1} parent=15 // pred_check
          %p158 = pneg %p85
        $region22: #{tpu_custom_call.1} parent=15 // pred_check_branch
          %160 = sbr.rel (%p158) target = $region24
        $region23: #{tpu_custom_call.1} parent=15 // pred_region
          %s161 = sand.u32 %s75, 1
          %s162 = scalar_lea.sflag [#allocation6], %s161
          %s163 = sand.u32 %s75, 1
          %s164 = smul.addr %s163, 2
          %s165 = scalar_lea.vmem [#allocation5], %s164
          %167 = vsyncadd %s162, 0
          %s168 = sadd.s32 %s22, %s21
          %s169 = smul.addr %s168, 2
          %s170 = scalar_lea.hbm %s1, %s169
          %s172 = sshll.u32 %s170, 4
          %s173 = int_to_ptr.hbm [resolvable:$true] %s172
          %s174 = sshll.u32 %s165, 4
          %s175 = int_to_ptr.vmem [resolvable:$true] %s174
          %177 = dma.hbm_to_vmem [thread:$0]  %s173, 32, %s175, %s162
        $region24: #{tpu_custom_call.1} parent=15 // pred_fallthru
          _
      $region16: #{tpu_custom_call.1} parent=5 // pred_fallthru
        _
      %p178 = scmp.le.s32.totalorder 1, %s14
      %p179 = scmp.lt.s32.totalorder %s14, 9
      %p180 = pnand %p178, %p179
      %p181 = pneg %p180
      // Predicated region
      $region25: #{tpu_custom_call.1} parent=5 // pred_check
        _
      $region26: #{tpu_custom_call.1} parent=5 // pred_check_branch
        %183 = sbr.rel (%p180) target = $region28
      $region27: #{tpu_custom_call.1} parent=5 // pred_region
        %s184 = ssub.s32 %s14, 1
        %s185 = sand.u32 %s50, 1
        %s186 = scalar_lea.sflag [#allocation4], %s185
        %s187 = sand.u32 %s50, 1
        %s188 = smul.addr %s187, 2
        %s189 = scalar_lea.vmem [#allocation3], %s188
        // Predicated region
        $region29: #{tpu_custom_call.1} parent=27 // pred_check
          %p190 = pneg %p63
        $region30: #{tpu_custom_call.1} parent=27 // pred_check_branch
          %192 = sbr.rel (%p190) target = $region32
        $region31: #{tpu_custom_call.1} parent=27 // pred_region
          %194 = dma.done %s186, 32
        $region32: #{tpu_custom_call.1} parent=27 // pred_fallthru
          _
        %s195 = sand.u32 %s78, 1
        %s196 = scalar_lea.sflag [#allocation6], %s195
        %s197 = sand.u32 %s78, 1
        %s198 = smul.addr %s197, 2
        %s199 = scalar_lea.vmem [#allocation5], %s198
        // Predicated region
        $region33: #{tpu_custom_call.1} parent=27 // pred_check
          %p200 = pneg %p91
        $region34: #{tpu_custom_call.1} parent=27 // pred_check_branch
          %202 = sbr.rel (%p200) target = $region36
        $region35: #{tpu_custom_call.1} parent=27 // pred_region
          %204 = dma.done %s196, 32
        $region36: #{tpu_custom_call.1} parent=27 // pred_fallthru
          _
        %s205 = sand.u32 %s50, 1
        %s206 = scalar_lea.sflag [#allocation4], %s205
        %s207 = sand.u32 %s50, 1
        %s208 = smul.addr %s207, 2
        %s209 = scalar_lea.vmem [#allocation3], %s208
        %p210 = pneg %p63
        %p211 = pneg %p60
        %s212 = sand.u32 %s78, 1
        %s213 = scalar_lea.sflag [#allocation6], %s212
        %s214 = sand.u32 %s78, 1
        %s215 = smul.addr %s214, 2
        %s216 = scalar_lea.vmem [#allocation5], %s215
        %p217 = pneg %p91
        %p218 = pneg %p88
        %p219 = pneg %p117
        %p220 = pneg %p114
        %p221 = scmp.lt.s32.totalorder %s24, 1
        %s222 = scalar_select %p221, %s24, 1
        %s223 = scalar_lea.vmem %s2, %s222
        %p224 = scmp.lt.s32.totalorder %s24, 1
        %s225 = scalar_select %p224, %s24, 1
        %s226 = scalar_lea.vmem %s2, %s225
        %p227 = scmp.eq.s32.totalorder %s25, 0
        %p228 = scmp.eq.s32.totalorder %s26, 0
        %p229 = pnand %p227, %p228
        %p230 = pneg %p229
        %p231 = scmp.eq.s32.totalorder %s26, 3
        %p232 = pnand %p227, %p231
        %p233 = pneg %p232
        // Predicated region
        $region37: #{tpu_custom_call.1} parent=27 // pred_check
          _
        $region38: #{tpu_custom_call.1} parent=27 // pred_check_branch
          %235 = sbr.rel (%p229) target = $region40
        $region39: #{tpu_custom_call.1} parent=27 // pred_region
          %236 = vst [vmem:[#allocation2] sm:$0x3] 0.0
        $region40: #{tpu_custom_call.1} parent=27 // pred_fallthru
          _
        %v237 = vld [vmem:[%s189] sm:$0x3]
        %v238 = vld [vmem:[%s199] sm:$0x3]
        %v239 = vstv %s26
        %vm240 = vcmp.eq.s32.totalorder %v238, %v239
        %v241 = vand.u32 2147483647, %v237
        %v242 = vsub.f32 0.0, %v241
        %v243 = vmul.f32 %v242, 1.442695
        %v244 = vpow.pop %v243
        %v245 = vadd.f32 %v244, 1.0
        %v246 = vlog2.pop %v245
        %v247 = vmul.f32 %v246, 0.6931472
        %v248 = vmul.f32 -0.5, %v244
        %v249 = vadd.f32 %v248, 1.0
        %v250 = vmul.f32 %v249, %v244
        %v251 = vand.u32 2147483647, %v244
        %vm252 = vcmp.lt.f32.partialorder %v251, 0.0004427343
        %v253 = vsel %vm252, %v250, %v247
        %v254 = vadd.f32 %v244, 1.0
        %v255 = vrcp.pop %v254
        %v256 = vmul.f32 %v254, %v255
        %v257 = vsub.f32 2.0, %v256
        %v258 = vmul.f32 %v255, %v257
        %vm259 = vcmp.ge.f32.partialorder %v237, 0.0
        %v260 = vmul.f32 %v244, %v258
        %v261 = vsel %vm259, %v258, %v260
        %v262 = vmax.f32 %v237, 0.0
        %v263 = vsel %vm240, %v237, 0.0
        %v264 = vsub.f32 %v262, %v263
        %v265 = vadd.f32 %v264, %v253
        %v266 = vsub.f32 1.0, %v261
        %v267 = vsel %vm240, %v266, %v261
        %v268 = vmul.f32 %v267, %v267
        %v269 = vmul.f32 %v265, %v268
        %v270 = vsel %vm240, 0.25, 0.75
        %v271 = vmul.f32 %v270, %v269
        %v272 = vmul.f32 %v268, %v267
        %v273 = vadd.f32 %v271, %v272
        %v274 = vld [vmem:[#allocation2] sm:$0x3]
        %v275 = vadd.f32 %v274, %v273
        %276 = vst [vmem:[#allocation2] sm:$0x3] %v275
        // Predicated region
        $region41: #{tpu_custom_call.1} parent=27 // pred_check
          _
        $region42: #{tpu_custom_call.1} parent=27 // pred_check_branch
          %278 = sbr.rel (%p232) target = $region44
        $region43: #{tpu_custom_call.1} parent=27 // pred_region
          %v279 = vld [vmem:[#allocation2] sm:$0x3]
          %vm280 = vcmask 1041408
          %v281 = vsel %vm280, %v279, 0.0
          %282 = vadd.xlane.f32.xlu0 %v281
          %v283 = vpop.xlane.xlu0 %282
          %v284 = vrot.slane %v283, 4
          %v285 = vadd.f32 %v283, %v284
          %v286 = vrot.slane %v285, 2
          %v287 = vadd.f32 %v285, %v286
          %v288 = vrot.slane %v287, 1
          %v289 = vadd.f32 %v287, %v288
          %s290 = vtos %v289
          %v291 = vstv %s290
          %vm292 = vcmask 0
          %293 = vst.msk [vmem:[%s226] sm:$0x1] %vm292, %v291
        $region44: #{tpu_custom_call.1} parent=27 // pred_fallthru
          _
        %p294 = scmp.lt.s32.totalorder %s24, 1
        %s295 = scalar_select %p294, %s24, 1
        %s296 = scalar_lea.vmem %s2, %s295
        // Predicated region
        $region45: #{tpu_custom_call.1} parent=27 // pred_check
          %p297 = pneg %p114
        $region46: #{tpu_custom_call.1} parent=27 // pred_check_branch
          %299 = sbr.rel (%p297) target = $region48
        $region47: #{tpu_custom_call.1} parent=27 // pred_region
          _
        $region48: #{tpu_custom_call.1} parent=27 // pred_fallthru
          _
      $region28: #{tpu_custom_call.1} parent=5 // pred_fallthru
        _
      %p300 = scmp.le.s32.totalorder 2, %s14
      // Predicated region
      $region49: #{tpu_custom_call.1} parent=5 // pred_check
        %p301 = pneg %p300
      $region50: #{tpu_custom_call.1} parent=5 // pred_check_branch
        %303 = sbr.rel (%p301) target = $region52
      $region51: #{tpu_custom_call.1} parent=5 // pred_region
        %s304 = ssub.s32 %s14, 2
        // Predicated region
        $region53: #{tpu_custom_call.1} parent=51 // pred_check
          %p305 = pneg %p120
        $region54: #{tpu_custom_call.1} parent=51 // pred_check_branch
          %307 = sbr.rel (%p305) target = $region56
        $region55: #{tpu_custom_call.1} parent=51 // pred_region
          %p308 = scmp.lt.s32.totalorder %s27, 1
          %s309 = scalar_select %p308, %s27, 1
          %s310 = scalar_lea.vmem %s2, %s309
        $region56: #{tpu_custom_call.1} parent=51 // pred_fallthru
          _
      $region52: #{tpu_custom_call.1} parent=5 // pred_fallthru
        _
    $region6: #{tpu_custom_call.1} parent=1 // loop_footer
      %s18 = sadd.s32 1, %s14
    $region7: #{tpu_custom_call.1} parent=1 // loop_footer_branch
      %13 = sbr.rel target = $region3
    $region8: #{tpu_custom_call.1} parent=1 // loop_exit
      _
    %311 = vsyncpa [#allocation4], 1
    %s312 = scalar_lea.sflag [#allocation4], 1
    %313 = vsyncpa %s312, 1
    %314 = vsyncpa [#allocation6], 1
    %s315 = scalar_lea.sflag [#allocation6], 1
    %316 = vsyncpa %s315, 1

</llo_original>
